<compile_context>
chip_gen: v7x
topology: tpu7x:2x2x1
jax: 0.10.0
libtpu: 0.0.40
codegen_flags: <defaults>
</compile_context>

<pallas_src>
import functools

import jax
import jax.numpy as jnp
from jax.experimental import pallas as pl
from jax.experimental.pallas import tpu as pltpu


def _round_up(x, m):
    return (x + m - 1) // m * m


# ---------------------------------------------------------------------------
# Kernel
# ---------------------------------------------------------------------------
def _gru_kernel(xh_ref, h_ref, w_ref, b_ref, *refs,
                hidden_dim, hp, use_layernorm):
    # refs = (gamma_ref, beta_ref, o_ref) if use_layernorm else (o_ref,)
    o_ref = refs[-1]

    # One fused MXU matmul: (TB, D+H) bf16 @ (D+H, 4*Hp) bf16 -> f32.
    # Slabs of g (each Hp wide, lane-aligned): [r_sum | z_sum | i_n | h_n].
    g = jnp.dot(xh_ref[...], w_ref[...],
                preferred_element_type=jnp.float32) + b_ref[...]

    r = jax.nn.sigmoid(g[:, 0 * hp:1 * hp])
    z = jax.nn.sigmoid(g[:, 1 * hp:2 * hp])
    n = jnp.tanh(g[:, 2 * hp:3 * hp] + r * g[:, 3 * hp:4 * hp])

    h = h_ref[...]                       # fp32, zero in padded lanes
    new_h = (1.0 - z) * n + z * h        # padded lanes stay exactly 0

    if use_layernorm:
        gamma = refs[0][...]
        beta = refs[1][...]
        inv_h = 1.0 / hidden_dim
        mean = jnp.sum(new_h, axis=-1, keepdims=True) * inv_h
        if hp != hidden_dim:
            lane = jax.lax.broadcasted_iota(jnp.int32, new_h.shape, 1)
            mask = (lane < hidden_dim).astype(jnp.float32)
            cent = (new_h - mean) * mask
        else:
            cent = new_h - mean
        var = jnp.sum(cent * cent, axis=-1, keepdims=True) * inv_h
        new_h = (new_h - mean) * jax.lax.rsqrt(var + 1e-5)
        new_h = new_h * gamma + beta

    o_ref[...] = new_h.astype(o_ref.dtype)


# ---------------------------------------------------------------------------
# Parameters (PyTorch layout) + one-time packing for the fused kernel
# ---------------------------------------------------------------------------
def init_params(key, input_dim, hidden_dim):
    """PyTorch-style GRUCell + LayerNorm params (gate order r, z, n)."""
    k = hidden_dim ** -0.5
    ks = jax.random.split(key, 4)
    w_ih = jax.random.uniform(ks[0], (3 * hidden_dim, input_dim),
                              jnp.float32, -k, k)
    w_hh = jax.random.uniform(ks[1], (3 * hidden_dim, hidden_dim),
                              jnp.float32, -k, k)
    b_ih = jax.random.uniform(ks[2], (3 * hidden_dim,), jnp.float32, -k, k)
    b_hh = jax.random.uniform(ks[3], (3 * hidden_dim,), jnp.float32, -k, k)
    gamma = jnp.ones((hidden_dim,), jnp.float32)
    beta = jnp.zeros((hidden_dim,), jnp.float32)
    return dict(w_ih=w_ih, w_hh=w_hh, b_ih=b_ih, b_hh=b_hh,
                gamma=gamma, beta=beta)


def prepare_params(params, input_dim, hidden_dim):
    """Pack weights once: fused (D+H, 4*Hp) bf16 matrix with lane-aligned gate
    slabs [r | z | n_input | n_hidden] plus matching f32 bias / LN params."""
    D, H = input_dim, hidden_dim
    Hp = _round_up(H, 128)
    w_ih, w_hh = params["w_ih"], params["w_hh"]

    w = jnp.zeros((D + H, 4 * Hp), jnp.float32)
    w = w.at[:D, 0 * Hp:0 * Hp + H].set(w_ih[0 * H:1 * H].T)   # i_r
    w = w.at[D:, 0 * Hp:0 * Hp + H].set(w_hh[0 * H:1 * H].T)   # h_r
    w = w.at[:D, 1 * Hp:1 * Hp + H].set(w_ih[1 * H:2 * H].T)   # i_z
    w = w.at[D:, 1 * Hp:1 * Hp + H].set(w_hh[1 * H:2 * H].T)   # h_z
    w = w.at[:D, 2 * Hp:2 * Hp + H].set(w_ih[2 * H:3 * H].T)   # i_n
    w = w.at[D:, 3 * Hp:3 * Hp + H].set(w_hh[2 * H:3 * H].T)   # h_n

    b = jnp.zeros((1, 4 * Hp), jnp.float32)
    b = b.at[0, 0 * Hp:0 * Hp + H].set(params["b_ih"][0 * H:1 * H]
                                       + params["b_hh"][0 * H:1 * H])
    b = b.at[0, 1 * Hp:1 * Hp + H].set(params["b_ih"][1 * H:2 * H]
                                       + params["b_hh"][1 * H:2 * H])
    b = b.at[0, 2 * Hp:2 * Hp + H].set(params["b_ih"][2 * H:3 * H])
    b = b.at[0, 3 * Hp:3 * Hp + H].set(params["b_hh"][2 * H:3 * H])

    gamma = jnp.zeros((1, Hp), jnp.float32).at[0, :H].set(params["gamma"])
    beta = jnp.zeros((1, Hp), jnp.float32).at[0, :H].set(params["beta"])
    return dict(w_packed=w.astype(jnp.bfloat16), b_packed=b,
                gamma=gamma, beta=beta, hp=Hp)


# ---------------------------------------------------------------------------
# Wrapper
# ---------------------------------------------------------------------------
def _choose_block_rows(n_rows, d_in, hp):
    """Largest batch block whose streamed blocks + fp32 temps fit a conservative
    budget (fits v7x's 64 MiB VMEM; resident weights counted separately)."""
    per_row = 2 * (2 * d_in + 8 * hp) + 32 * hp   # dbl-buffered blocks + temps
    budget = 16 << 20
    tb = budget // max(per_row, 1)
    tb = max(8, min(1024, (tb // 8) * 8))
    return n_rows if tb >= n_rows else tb


def gru_layer_forward(x, hiddens, prepared, *, hidden_dim, use_layernorm):
    """Mirrors GRULayer.forward: flatten leading dims, GRUCell, optional
    LayerNorm, restore hiddens shape."""
    if hiddens is None:
        hiddens = jnp.zeros((x.shape[0], hidden_dim), jnp.float32)

    hiddens_shape = None
    if hiddens.ndim > 2:
        hiddens_shape = hiddens.shape
        hiddens = hiddens.reshape(-1, hidden_dim)
        x = x.reshape(-1, x.shape[-1])

    B, D = x.shape
    H = hidden_dim
    Hp = prepared["hp"]
    Din = D + H

    # bf16 operands for the MXU; fp32 state / elementwise everywhere else.
    xh = jnp.concatenate([x, hiddens], axis=-1).astype(jnp.bfloat16)

    h = hiddens
    fresh_h = False
    if h.dtype != jnp.float32:
        h = h.astype(jnp.float32)
        fresh_h = True
    if Hp != H:
        h = jnp.pad(h, ((0, 0), (0, Hp - H)))
        fresh_h = True

    TB = _choose_block_rows(B, Din, Hp)
    grid = (pl.cdiv(B, TB),)

    # VMEM budget: resident weights + double-buffered streams + fp32 temps.
    w_bytes = Din * 4 * Hp * 2
    stream_bytes = 2 * TB * (2 * Din + 8 * Hp)
    temp_bytes = 32 * TB * Hp
    need = w_bytes + stream_bytes + temp_bytes + (1 << 20)
    vmem_limit = int(min(max(2 * need, 32 << 20), 64 << 20))

    resident = lambda i: (0, 0)   # stays in VMEM across all grid steps
    batched = lambda i: (i, 0)    # streamed per batch block

    in_specs = [
        pl.BlockSpec((TB, Din), batched),        # [x | h] (bf16, MXU operand)
        pl.BlockSpec((TB, Hp), batched),         # h (fp32, aliased to output)
        pl.BlockSpec((Din, 4 * Hp), resident),   # packed weight (bf16)
        pl.BlockSpec((1, 4 * Hp), resident),     # packed bias (fp32)
    ]
    args = [xh, h, prepared["w_packed"], prepared["b_packed"]]
    if use_layernorm:
        in_specs += [pl.BlockSpec((1, Hp), resident),
                     pl.BlockSpec((1, Hp), resident)]
        args += [prepared["gamma"], prepared["beta"]]

    kernel = functools.partial(_gru_kernel, hidden_dim=H, hp=Hp,
                               use_layernorm=use_layernorm)

    out = pl.pallas_call(
        kernel,
        out_shape=jax.ShapeDtypeStruct((B, Hp), jnp.float32),
        grid=grid,
        in_specs=in_specs,
        out_specs=pl.BlockSpec((TB, Hp), batched),
        # In-place state update, only when the padded h is a private temp.
        input_output_aliases={1: 0} if fresh_h else {},
        compiler_params=pltpu.CompilerParams(
            dimension_semantics=("parallel",),
            vmem_limit_bytes=vmem_limit),
    )(*args)

    if Hp != H:
        out = out[:, :H]
    if hiddens_shape is not None:
        out = out.reshape(hiddens_shape)
    return out


# ---------------------------------------------------------------------------
# Pure-JAX reference (matches kernel matmul precision: bf16 in, fp32 accumulate)
# ---------------------------------------------------------------------------
def _reference(x, hiddens, params, hidden_dim, use_layernorm):
    shp = None
    if hiddens.ndim > 2:
        shp = hiddens.shape
        hiddens = hiddens.reshape(-1, hidden_dim)
        x = x.reshape(-1, x.shape[-1])
    H = hidden_dim
    xb = x.astype(jnp.bfloat16)
    hb = hiddens.astype(jnp.bfloat16)
    wih = params["w_ih"].astype(jnp.bfloat16)
    whh = params["w_hh"].astype(jnp.bfloat16)
    gi = jnp.dot(xb, wih.T, preferred_element_type=jnp.float32) + params["b_ih"]
    gh = jnp.dot(hb, whh.T, preferred_element_type=jnp.float32) + params["b_hh"]
    r = jax.nn.sigmoid(gi[:, :H] + gh[:, :H])
    z = jax.nn.sigmoid(gi[:, H:2 * H] + gh[:, H:2 * H])
    n = jnp.tanh(gi[:, 2 * H:] + r * gh[:, 2 * H:])
    h = (1.0 - z) * n + z * hiddens
    if use_layernorm:
        mean = h.mean(-1, keepdims=True)
        var = ((h - mean) ** 2).mean(-1, keepdims=True)
        h = (h - mean) / jnp.sqrt(var + 1e-5) * params["gamma"] + params["beta"]
    if shp is not None:
        h = h.reshape(shp)
    return h


if __name__ == "__main__":
    input_dim, hidden_dim = 16, 32

    key = jax.random.PRNGKey(0)
    kp, kx, kh = jax.random.split(key, 3)
    params = init_params(kp, input_dim, hidden_dim)
    prepared = prepare_params(params, input_dim, hidden_dim)

    # Multi-agent style input: hiddens has >2 dims -> exercises the reshape path.
    x = jax.random.normal(kx, (2, 4, input_dim), jnp.float32)
    hiddens = jax.random.normal(kh, (2, 4, hidden_dim), jnp.float32)

    # With LayerNorm
    out_ln = gru_layer_forward(x, hiddens, prepared,
                               hidden_dim=hidden_dim, use_layernorm=True)
    out_ln = jax.block_until_ready(out_ln)
    ref_ln = _reference(x, hiddens, params, hidden_dim, True)
    assert out_ln.shape == hiddens.shape
    assert jnp.allclose(out_ln, ref_ln, atol=5e-3, rtol=5e-3), (
        f"LN mismatch, max abs err {jnp.max(jnp.abs(out_ln - ref_ln)):.3e}")

    # Without LayerNorm (gamma/beta not passed / not DMA'd)
    out_nl = gru_layer_forward(x, hiddens, prepared,
                               hidden_dim=hidden_dim, use_layernorm=False)
    out_nl = jax.block_until_ready(out_nl)
    ref_nl = _reference(x, hiddens, params, hidden_dim, False)
    assert out_nl.shape == hiddens.shape
    assert jnp.allclose(out_nl, ref_nl, atol=5e-3, rtol=5e-3), (
        f"no-LN mismatch, max abs err {jnp.max(jnp.abs(out_nl - ref_nl)):.3e}")

    print("KERNEL_OK")
</pallas_src>

<mosaic_0001>
module attributes {stable_mosaic.version = 11 : i64} {
  func.func @_gru_kernel(%arg0: i32, %arg1: memref<8x48xbf16, #tpu.memory_space<vmem>>, %arg2: memref<8x128xf32, #tpu.memory_space<vmem>>, %arg3: memref<48x512xbf16, #tpu.memory_space<vmem>>, %arg4: memref<1x512xf32, #tpu.memory_space<vmem>>, %arg5: memref<1x128xf32, #tpu.memory_space<vmem>>, %arg6: memref<1x128xf32, #tpu.memory_space<vmem>>, %arg7: memref<8x128xf32, #tpu.memory_space<vmem>>) attributes {dimension_semantics = [#tpu.dimension_semantics<parallel>], iteration_bounds = array<i64: 1>, scalar_prefetch = 0 : i64, scratch_operands = 0 : i64, tpu.core_type = #tpu.core_type<tc>, window_params = [{transform_indices = @transform_0, window_bounds = array<i64: 8, 48>}, {transform_indices = @transform_1, window_bounds = array<i64: 8, 128>}, {pipeline_mode = #tpu.pipeline_mode<synchronous>, transform_indices = @transform_2, window_bounds = array<i64: 48, 512>}, {pipeline_mode = #tpu.pipeline_mode<synchronous>, transform_indices = @transform_3, window_bounds = array<i64: 1, 512>}, {pipeline_mode = #tpu.pipeline_mode<synchronous>, transform_indices = @transform_4, window_bounds = array<i64: 1, 128>}, {pipeline_mode = #tpu.pipeline_mode<synchronous>, transform_indices = @transform_5, window_bounds = array<i64: 1, 128>}, {transform_indices = @transform_6, window_bounds = array<i64: 8, 128>}]} {
    %c0 = arith.constant 0 : index
    %c0_0 = arith.constant 0 : index
    %0 = vector.load %arg1[%c0, %c0_0] : memref<8x48xbf16, #tpu.memory_space<vmem>>, vector<8x48xbf16>
    %c0_1 = arith.constant 0 : index
    %c0_2 = arith.constant 0 : index
    %1 = vector.load %arg3[%c0_1, %c0_2] : memref<48x512xbf16, #tpu.memory_space<vmem>>, vector<48x512xbf16>
    %cst = arith.constant dense<0.000000e+00> : vector<8x512xf32>
    %2 = tpu.matmul %0, %1, %cst {dimension_numbers = #tpu.dot_dimension_numbers<[1], [0], [0], [1], [0, 0, 1, 1], [], []>} : vector<8x48xbf16>, vector<48x512xbf16>, vector<8x512xf32> -> vector<8x512xf32>
    %c0_3 = arith.constant 0 : index
    %c0_4 = arith.constant 0 : index
    %3 = vector.load %arg4[%c0_3, %c0_4] : memref<1x512xf32, #tpu.memory_space<vmem>>, vector<1x512xf32>
    %4 = vector.broadcast %3 : vector<1x512xf32> to vector<8x512xf32>
    %5 = arith.addf %2, %4 : vector<8x512xf32>
    %6 = vector.extract_strided_slice %5 {offsets = [0, 0], sizes = [8, 128], strides = [1, 1]} : vector<8x512xf32> to vector<8x128xf32>
    %7 = arith.negf %6 : vector<8x128xf32>
    %8 = math.exp %7 : vector<8x128xf32>
    %cst_5 = arith.constant 1.000000e+00 : f32
    %9 = vector.broadcast %cst_5 : f32 to vector<8x128xf32>
    %10 = arith.addf %9, %8 : vector<8x128xf32>
    %11 = arith.divf %9, %10 : vector<8x128xf32>
    %12 = vector.extract_strided_slice %5 {offsets = [0, 128], sizes = [8, 128], strides = [1, 1]} : vector<8x512xf32> to vector<8x128xf32>
    %13 = arith.negf %12 : vector<8x128xf32>
    %14 = math.exp %13 : vector<8x128xf32>
    %cst_6 = arith.constant 1.000000e+00 : f32
    %15 = vector.broadcast %cst_6 : f32 to vector<8x128xf32>
    %16 = arith.addf %15, %14 : vector<8x128xf32>
    %17 = arith.divf %15, %16 : vector<8x128xf32>
    %18 = vector.extract_strided_slice %5 {offsets = [0, 256], sizes = [8, 128], strides = [1, 1]} : vector<8x512xf32> to vector<8x128xf32>
    %19 = vector.extract_strided_slice %5 {offsets = [0, 384], sizes = [8, 128], strides = [1, 1]} : vector<8x512xf32> to vector<8x128xf32>
    %20 = arith.mulf %11, %19 : vector<8x128xf32>
    %21 = arith.addf %18, %20 : vector<8x128xf32>
    %22 = math.tanh %21 : vector<8x128xf32>
    %c0_7 = arith.constant 0 : index
    %c0_8 = arith.constant 0 : index
    %23 = vector.load %arg2[%c0_7, %c0_8] : memref<8x128xf32, #tpu.memory_space<vmem>>, vector<8x128xf32>
    %cst_9 = arith.constant 1.000000e+00 : f32
    %24 = vector.broadcast %cst_9 : f32 to vector<8x128xf32>
    %25 = arith.subf %24, %17 : vector<8x128xf32>
    %26 = arith.mulf %25, %22 : vector<8x128xf32>
    %27 = arith.mulf %17, %23 : vector<8x128xf32>
    %28 = arith.addf %26, %27 : vector<8x128xf32>
    %c0_10 = arith.constant 0 : index
    %c0_11 = arith.constant 0 : index
    %29 = vector.load %arg5[%c0_10, %c0_11] : memref<1x128xf32, #tpu.memory_space<vmem>>, vector<1x128xf32>
    %c0_12 = arith.constant 0 : index
    %c0_13 = arith.constant 0 : index
    %30 = vector.load %arg6[%c0_12, %c0_13] : memref<1x128xf32, #tpu.memory_space<vmem>>, vector<1x128xf32>
    %cst_14 = arith.constant dense<0.000000e+00> : vector<8xf32>
    %31 = vector.multi_reduction <add>, %28, %cst_14 [1] : vector<8x128xf32> to vector<8xf32>
    %32 = vector.shape_cast %31 : vector<8xf32> to vector<8x1xf32>
    %cst_15 = arith.constant 3.125000e-02 : f32
    %33 = vector.broadcast %cst_15 : f32 to vector<8x1xf32>
    %34 = arith.mulf %32, %33 : vector<8x1xf32>
    %35 = tpu.iota {dimensions = array<i32: 1>} : vector<8x128xi32>
    %c32_i32 = arith.constant 32 : i32
    %36 = vector.broadcast %c32_i32 : i32 to vector<8x128xi32>
    %37 = arith.cmpi slt, %35, %36 : vector<8x128xi32>
    %38 = arith.extui %37 : vector<8x128xi1> to vector<8x128xi32>
    %39 = arith.sitofp %38 : vector<8x128xi32> to vector<8x128xf32>
    %40 = vector.broadcast %34 : vector<8x1xf32> to vector<8x128xf32>
    %41 = arith.subf %28, %40 : vector<8x128xf32>
    %42 = arith.mulf %41, %39 : vector<8x128xf32>
    %43 = arith.mulf %42, %42 : vector<8x128xf32>
    %cst_16 = arith.constant dense<0.000000e+00> : vector<8xf32>
    %44 = vector.multi_reduction <add>, %43, %cst_16 [1] : vector<8x128xf32> to vector<8xf32>
    %45 = vector.shape_cast %44 : vector<8xf32> to vector<8x1xf32>
    %cst_17 = arith.constant 3.125000e-02 : f32
    %46 = vector.broadcast %cst_17 : f32 to vector<8x1xf32>
    %47 = arith.mulf %45, %46 : vector<8x1xf32>
    %48 = vector.broadcast %34 : vector<8x1xf32> to vector<8x128xf32>
    %49 = arith.subf %28, %48 : vector<8x128xf32>
    %cst_18 = arith.constant 9.99999974E-6 : f32
    %50 = vector.broadcast %cst_18 : f32 to vector<8x1xf32>
    %51 = arith.addf %47, %50 : vector<8x1xf32>
    %52 = math.rsqrt %51 : vector<8x1xf32>
    %53 = vector.broadcast %52 : vector<8x1xf32> to vector<8x128xf32>
    %54 = arith.mulf %49, %53 : vector<8x128xf32>
    %55 = vector.broadcast %29 : vector<1x128xf32> to vector<8x128xf32>
    %56 = arith.mulf %54, %55 : vector<8x128xf32>
    %57 = vector.broadcast %30 : vector<1x128xf32> to vector<8x128xf32>
    %58 = arith.addf %56, %57 : vector<8x128xf32>
    %c0_19 = arith.constant 0 : index
    %c0_20 = arith.constant 0 : index
    %59 = vector.load %arg7[%c0_19, %c0_20] : memref<8x128xf32, #tpu.memory_space<vmem>>, vector<8x128xf32>
    tpu.vector_store %arg7[%c0_19, %c0_20], %58 {strides = array<i32>} : memref<8x128xf32, #tpu.memory_space<vmem>>, vector<8x128xf32>,
    return
  }
  func.func @transform_0(%arg0: i32) -> (i32, i32) {
    %c0_i32 = arith.constant 0 : i32
    %c0_i32_0 = arith.constant 0 : i32
    return %arg0, %c0_i32 : i32, i32
  }
  func.func @transform_1(%arg0: i32) -> (i32, i32) {
    %c0_i32 = arith.constant 0 : i32
    %c0_i32_0 = arith.constant 0 : i32
    return %arg0, %c0_i32 : i32, i32
  }
  func.func @transform_2(%arg0: i32) -> (i32, i32) {
    %c0_i32 = arith.constant 0 : i32
    %c0_i32_0 = arith.constant 0 : i32
    %c0_i32_1 = arith.constant 0 : i32
    return %c0_i32, %c0_i32_0 : i32, i32
  }
  func.func @transform_3(%arg0: i32) -> (i32, i32) {
    %c0_i32 = arith.constant 0 : i32
    %c0_i32_0 = arith.constant 0 : i32
    %c0_i32_1 = arith.constant 0 : i32
    return %c0_i32, %c0_i32_0 : i32, i32
  }
  func.func @transform_4(%arg0: i32) -> (i32, i32) {
    %c0_i32 = arith.constant 0 : i32
    %c0_i32_0 = arith.constant 0 : i32
    %c0_i32_1 = arith.constant 0 : i32
    return %c0_i32, %c0_i32_0 : i32, i32
  }
  func.func @transform_5(%arg0: i32) -> (i32, i32) {
    %c0_i32 = arith.constant 0 : i32
    %c0_i32_0 = arith.constant 0 : i32
    %c0_i32_1 = arith.constant 0 : i32
    return %c0_i32, %c0_i32_0 : i32, i32
  }
  func.func @transform_6(%arg0: i32) -> (i32, i32) {
    %c0_i32 = arith.constant 0 : i32
    %c0_i32_0 = arith.constant 0 : i32
    return %arg0, %c0_i32 : i32, i32
  }
}

</mosaic_0001>

<llo_original>
// kernel: tpu_custom_call.1
$region0: #{tpu_custom_call.1}
  #allocation0 [shape = 'u32[]', space=smem, size = 0x4, offset = 0x4, fixed_abs, tag = 'smem constant byte address 0x4 - core index']
  #allocation1 [shape = 'u32[144,128]{1,0:T(1,128)}', space=vmem, size = 0x12000, scoped, tag = 'internal scratch']
  %s0 = inlined_call_operand.vmem [shape: bf16[8,48], index: 0, kind: input, shape index: {}]
  %s1 = inlined_call_operand.hbm [shape: f32[8,128], index: 1, kind: input, shape index: {}, may-alias: {1,6}]
  %s2 = inlined_call_operand.hbm [shape: bf16[48,512], index: 2, kind: input, shape index: {}]
  %s3 = inlined_call_operand.vmem [shape: f32[1,512], index: 3, kind: input, shape index: {}]
  %s4 = inlined_call_operand.vmem [shape: f32[1,128], index: 4, kind: input, shape index: {}]
  %s5 = inlined_call_operand.vmem [shape: f32[1,128], index: 5, kind: input, shape index: {}]
  %s6 = inlined_call_operand.hbm [shape: f32[8,128], index: 6, kind: output, shape index: {}, may-alias: {1,6}]
  %s7 = sld [smem:[#allocation0]]
  $region42: #{tpu_custom_call.1} parent=0
    _
  %s9 = ssub.s32 1, %s7
  %s10 = scalar_select 0, %s9, %s7
  $region1: #{tpu_custom_call.1} parent=0
    #allocation2 [shape = 'u8[4096]{0}', space=vmem, size = 0x1000, scoped, tag = 'input window, operand 1, single buffered']
    #allocation3 [shape = 's32[1]{0}', space=sflag, size = 0x4, scoped, tag = 'scoped memory for tpu_custom_call.1']
    #allocation4 [shape = 's32[1]{0}', space=sflag, size = 0x4, scoped, tag = 'scoped memory for tpu_custom_call.1']
    #allocation5 [shape = 'u8[49152]{0}', space=vmem, size = 0xc000, scoped, tag = 'input window, operand 2, single buffered']
    #allocation6 [shape = 's32[1]{0}', space=sflag, size = 0x4, scoped, tag = 'scoped memory for tpu_custom_call.1']
    #allocation7 [shape = 'u8[4096]{0}', space=vmem, size = 0x1000, scoped, tag = 'output window, operand 0, single buffered']
    %11 = vsyncpa [#allocation3], 0
    %12 = vsyncpa [#allocation6], 0
    %13 = vsyncpa [#allocation4], 0
    // Predicated region
    $region2: #{tpu_custom_call.1} parent=1 // pred_check
      _
    $region3: #{tpu_custom_call.1} parent=1 // pred_check_branch
      %15 = sbr.rel (0) target = $region5
    $region4: #{tpu_custom_call.1} parent=1 // pred_region
      _
    $region5: #{tpu_custom_call.1} parent=1 // pred_fallthru
      _
    // Predicated region
    $region6: #{tpu_custom_call.1} parent=1 // pred_check
      _
    $region7: #{tpu_custom_call.1} parent=1 // pred_check_branch
      %17 = sbr.rel (0) target = $region9
    $region8: #{tpu_custom_call.1} parent=1 // pred_region
      %s19 = ssub.s32 128, 128
      %20 = vsyncadd [#allocation3], %s19
      %s22 = sshll.u32 [#allocation2], 4
      %s23 = int_to_ptr.vmem [resolvable:$true] %s22
      %25 = dma.hbm_to_vmem [thread:$0]  %s1, 128, %s23, [#allocation3]
    $region9: #{tpu_custom_call.1} parent=1 // pred_fallthru
      _
    // Predicated region
    $region10: #{tpu_custom_call.1} parent=1 // pred_check
      _
    $region11: #{tpu_custom_call.1} parent=1 // pred_check_branch
      %27 = sbr.rel (0) target = $region13
    $region12: #{tpu_custom_call.1} parent=1 // pred_region
      %s29 = ssub.s32 1536, 1536
      %30 = vsyncadd [#allocation6], %s29
      %s31 = sshll.u32 [#allocation5], 4
      %s32 = int_to_ptr.vmem [resolvable:$true] %s31
      %37 = dma.hbm_to_vmem [thread:$0]  %s2, 1536, %s32, [#allocation6], 256, 256, 16
    $region13: #{tpu_custom_call.1} parent=1 // pred_fallthru
      _
    // Predicated region
    $region14: #{tpu_custom_call.1} parent=1 // pred_check
      _
    $region15: #{tpu_custom_call.1} parent=1 // pred_check_branch
      %39 = sbr.rel (0) target = $region17
    $region16: #{tpu_custom_call.1} parent=1 // pred_region
      _
    $region17: #{tpu_custom_call.1} parent=1 // pred_fallthru
      _
    // Predicated region
    $region18: #{tpu_custom_call.1} parent=1 // pred_check
      _
    $region19: #{tpu_custom_call.1} parent=1 // pred_check_branch
      %41 = sbr.rel (0) target = $region21
    $region20: #{tpu_custom_call.1} parent=1 // pred_region
      _
    $region21: #{tpu_custom_call.1} parent=1 // pred_fallthru
      _
    // Predicated region
    $region22: #{tpu_custom_call.1} parent=1 // pred_check
      _
    $region23: #{tpu_custom_call.1} parent=1 // pred_check_branch
      %43 = sbr.rel (0) target = $region25
    $region24: #{tpu_custom_call.1} parent=1 // pred_region
      _
    $region25: #{tpu_custom_call.1} parent=1 // pred_fallthru
      _
    // Predicated region
    $region26: #{tpu_custom_call.1} parent=1 // pred_check
      _
    $region27: #{tpu_custom_call.1} parent=1 // pred_check_branch
      %45 = sbr.rel (0) target = $region29
    $region28: #{tpu_custom_call.1} parent=1 // pred_region
      %46 = dma.done [#allocation3], 128
    $region29: #{tpu_custom_call.1} parent=1 // pred_fallthru
      _
    // Predicated region
    $region30: #{tpu_custom_call.1} parent=1 // pred_check
      _
    $region31: #{tpu_custom_call.1} parent=1 // pred_check_branch
      %48 = sbr.rel (0) target = $region33
    $region32: #{tpu_custom_call.1} parent=1 // pred_region
      %49 = dma.done [#allocation6], 1536
    $region33: #{tpu_custom_call.1} parent=1 // pred_fallthru
      _
    %v51 = vld [vmem:[%s0] sm:$0xf]
    %v52 = vld [vmem:[#allocation5] sm:$0xff]
    %v53 = vld [vmem:[#allocation5 + $0x8] sm:$0xff]
    %v54 = vld [vmem:[#allocation5 + $0x10] sm:$0xff]
    %v55 = vld [vmem:[#allocation5 + $0x18] sm:$0xff]
    %v56 = vld [vmem:[#allocation5 + $0x20] sm:$0xff]
    %v57 = vld [vmem:[#allocation5 + $0x28] sm:$0xff]
    %v58 = vld [vmem:[#allocation5 + $0x30] sm:$0xff]
    %v59 = vld [vmem:[#allocation5 + $0x38] sm:$0xff]
    %v60 = vld [vmem:[#allocation5 + $0x40] sm:$0xff]
    %v61 = vld [vmem:[#allocation5 + $0x48] sm:$0xff]
    %v62 = vld [vmem:[#allocation5 + $0x50] sm:$0xff]
    %v63 = vld [vmem:[#allocation5 + $0x58] sm:$0xff]
    %v64 = vld [vmem:[%s3] sm:$0xf]
    %v66 = vlaneseq
    %v67 = vshrl.u32 %v66, 7
    %v68 = vsub.s32 0, %v67
    %v69 = vrot.slane %v64, %v68
    %v70 = vlaneseq
    %v71 = vshrl.u32 %v70, 7
    %v72 = vsub.s32 1, %v71
    %v73 = vrot.slane %v64, %v72
    %v74 = vlaneseq
    %v75 = vshrl.u32 %v74, 7
    %v76 = vsub.s32 2, %v75
    %v77 = vrot.slane %v64, %v76
    %v78 = vlaneseq
    %v79 = vshrl.u32 %v78, 7
    %v80 = vsub.s32 3, %v79
    %v81 = vrot.slane %v64, %v80
    %v98 = vunpack.c.l.b16 %v52
    %v99 = vunpack.c.h.b16 %v52
    %v100 = vunpack.c.l.b16 %v53
    %v101 = vunpack.c.h.b16 %v53
    %v102 = vunpack.c.l.b16 %v54
    %v103 = vunpack.c.h.b16 %v54
    %v104 = vunpack.c.l.b16 %v55
    %v105 = vunpack.c.h.b16 %v55
    %v106 = vunpack.c.l.b16 %v56
    %v107 = vunpack.c.h.b16 %v56
    %v108 = vunpack.c.l.b16 %v57
    %v109 = vunpack.c.h.b16 %v57
    %v110 = vunpack.c.l.b16 %v58
    %v111 = vunpack.c.h.b16 %v58
    %v112 = vunpack.c.l.b16 %v59
    %v113 = vunpack.c.h.b16 %v59
    %v114 = vunpack.c.l.b16 %v60
    %v115 = vunpack.c.h.b16 %v60
    %v116 = vunpack.c.l.b16 %v61
    %v117 = vunpack.c.h.b16 %v61
    %v118 = vunpack.c.l.b16 %v62
    %v119 = vunpack.c.h.b16 %v62
    %v120 = vunpack.c.l.b16 %v63
    %v121 = vunpack.c.h.b16 %v63
    %v122 = vpack.c.b16 %v102, %v98
    %v123 = vpack.c.b16 %v103, %v99
    %v124 = vpack.c.b16 %v104, %v100
    %v125 = vpack.c.b16 %v105, %v101
    %v126 = vpack.c.b16 %v110, %v106
    %v127 = vpack.c.b16 %v111, %v107
    %v128 = vpack.c.b16 %v112, %v108
    %v129 = vpack.c.b16 %v113, %v109
    %v130 = vpack.c.b16 %v118, %v114
    %v131 = vpack.c.b16 %v119, %v115
    %v132 = vpack.c.b16 %v120, %v116
    %v133 = vpack.c.b16 %v121, %v117
    %vm146 = vcmask 392192
    %v148 = vsel %vm146, %v51, 0
    %150 = vmatprep.subr.bf16.mxu0 %v123
    %151 = vmatpush1.bf16.msra.mxu0 %v122
    %152 = vmatprep.subr.bf16.mxu0 %v127
    %153 = vmatpush1.bf16.msra.mxu0 %v126
    %154 = vmatprep.subr.bf16.mxu0 %v131
    %155 = vmatpush1.bf16.msra.mxu0 %v130
    %156 = vmatprep.subr.bf16.mxu0 0
    %157 = vmatpush1.bf16.msra.mxu0 0
    %158 = vmatprep.subr.bf16.mxu0 0
    %159 = vmatpush1.bf16.msra.mxu0 0
    %160 = vmatprep.subr.bf16.mxu0 0
    %161 = vmatpush1.bf16.msra.mxu0 0
    %162 = vmatprep.subr.bf16.mxu0 0
    %163 = vmatpush1.bf16.msra.mxu0 0
    %164 = vmatprep.subr.bf16.mxu0 0
    %165 = vmatpush1.bf16.msra.mxu0 0
    %166 = vmatprep.subr.bf16.mxu0 0
    %167 = vmatpush1.bf16.msra.mxu0 0
    %168 = vmatprep.subr.bf16.mxu0 0
    %169 = vmatpush1.bf16.msra.mxu0 0
    %170 = vmatprep.subr.bf16.mxu0 0
    %171 = vmatpush1.bf16.msra.mxu0 0
    %172 = vmatprep.subr.bf16.mxu0 0
    %173 = vmatpush1.bf16.msra.mxu0 0
    %174 = vmatprep.subr.bf16.mxu0 0
    %175 = vmatpush1.bf16.msra.mxu0 0
    %176 = vmatprep.subr.bf16.mxu0 0
    %177 = vmatpush1.bf16.msra.mxu0 0
    %178 = vmatprep.subr.bf16.mxu0 0
    %179 = vmatpush1.bf16.msra.mxu0 0
    %180 = vmatprep.subr.bf16.mxu0 0
    %181 = vmatpush1.bf16.msra.mxu0 0
    %182 = vmatprep.mubr.bf16.mxu0 0
    %183 = vmatmul.mubr.bf16.gmra.mrb[0].mxu0 %v148
    %v184 = vpop.f32.mrb[0].mxu0
    %v185 = vadd.f32 %v69, %v184
    %v186 = vpop.f32.mrb[0].mxu0
    %v187 = vadd.f32 %v73, %v186
    %v188 = vpop.f32.mrb[0].mxu0
    %v189 = vpop.f32.mrb[0].mxu0
    %190 = vdwg.mxu0
    %191 = vmatprep.subr.bf16.mxu0 %v125
    %192 = vmatpush1.bf16.msra.mxu0 %v124
    %193 = vmatprep.subr.bf16.mxu0 %v129
    %194 = vmatpush1.bf16.msra.mxu0 %v128
    %195 = vmatprep.subr.bf16.mxu0 %v133
    %196 = vmatpush1.bf16.msra.mxu0 %v132
    %197 = vmatprep.subr.bf16.mxu0 0
    %198 = vmatpush1.bf16.msra.mxu0 0
    %199 = vmatprep.subr.bf16.mxu0 0
    %200 = vmatpush1.bf16.msra.mxu0 0
    %201 = vmatprep.subr.bf16.mxu0 0
    %202 = vmatpush1.bf16.msra.mxu0 0
    %203 = vmatprep.subr.bf16.mxu0 0
    %204 = vmatpush1.bf16.msra.mxu0 0
    %205 = vmatprep.subr.bf16.mxu0 0
    %206 = vmatpush1.bf16.msra.mxu0 0
    %207 = vmatprep.subr.bf16.mxu0 0
    %208 = vmatpush1.bf16.msra.mxu0 0
    %209 = vmatprep.subr.bf16.mxu0 0
    %210 = vmatpush1.bf16.msra.mxu0 0
    %211 = vmatprep.subr.bf16.mxu0 0
    %212 = vmatpush1.bf16.msra.mxu0 0
    %213 = vmatprep.subr.bf16.mxu0 0
    %214 = vmatpush1.bf16.msra.mxu0 0
    %215 = vmatprep.subr.bf16.mxu0 0
    %216 = vmatpush1.bf16.msra.mxu0 0
    %217 = vmatprep.subr.bf16.mxu0 0
    %218 = vmatpush1.bf16.msra.mxu0 0
    %219 = vmatprep.subr.bf16.mxu0 0
    %220 = vmatpush1.bf16.msra.mxu0 0
    %221 = vmatprep.subr.bf16.mxu0 0
    %222 = vmatpush1.bf16.msra.mxu0 0
    %223 = vmatprep.mubr.bf16.mxu0 0
    %224 = vmatmul.mubr.bf16.gmra.mrb[0].mxu0 %v148
    %v225 = vpop.f32.mrb[0].mxu0
    %v226 = vadd.f32 %v77, %v225
    %v227 = vpop.f32.mrb[0].mxu0
    %v228 = vadd.f32 %v81, %v227
    %v229 = vpop.f32.mrb[0].mxu0
    %v230 = vpop.f32.mrb[0].mxu0
    %231 = vdwg.mxu0
    %v232 = vxor.u32 %v185, 2147483648
    %v233 = vmul.f32 %v232, 1.442695
    %v234 = vpow.pop %v233
    %v235 = vadd.f32 %v234, 1.0
    %v236 = vrcp.pop %v235
    %v237 = vmul.f32 1.0, %v236
    %v238 = vxor.u32 %v187, 2147483648
    %v239 = vmul.f32 %v238, 1.442695
    %v240 = vpow.pop %v239
    %v241 = vadd.f32 %v240, 1.0
    %v242 = vrcp.pop %v241
    %v243 = vmul.f32 1.0, %v242
    %v244 = vmul.f32 %v237, %v228
    %v245 = vadd.f32 %v226, %v244
    %v246 = vtanh.pop %v245
    %v247 = vld [vmem:[#allocation2] sm:$0xff]
    %v248 = vsub.f32 1.0, %v243
    %v249 = vmul.f32 %v248, %v246
    %v250 = vmul.f32 %v243, %v247
    %v251 = vadd.f32 %v249, %v250
    %v252 = vld [vmem:[%s4] sm:$0x1]
    %v253 = vld [vmem:[%s5] sm:$0x1]
    %254 = vadd.xlane.f32.xlu0 %v251
    %v255 = vpop.xlane.xlu0 %254
    %v256 = vmul.f32 %v255, 0.03125
    %v257 = vlaneseq
    %v258 = vand.u32 %v257, 127
    %vm259 = vcmp.lt.s32.totalorder %v258, 32
    %v260 = vsel %vm259, 1, 0
    %v261 = vcvt.s32.f32 %v260
    %v262 = vsub.f32 %v251, %v256
    %v263 = vmul.f32 %v262, %v261
    %v264 = vmul.f32 %v263, %v263
    %265 = vadd.xlane.f32.xlu0 %v264
    %v266 = vpop.xlane.xlu0 %265
    %v267 = vmul.f32 %v266, 0.03125
    %v268 = vadd.f32 %v267, 1e-05
    %v269 = vrsqrt.pop %v268
    %v270 = vmul.f32 %v262, %v269
    %v272 = vlaneseq
    %v273 = vshrl.u32 %v272, 7
    %v274 = vsub.s32 0, %v273
    %v275 = vrot.slane %v252, %v274
    %v277 = vmul.f32 %v270, %v275
    %v279 = vlaneseq
    %v280 = vshrl.u32 %v279, 7
    %v281 = vsub.s32 0, %v280
    %v282 = vrot.slane %v253, %v281
    %v284 = vadd.f32 %v277, %v282
    %285 = vst [vmem:[#allocation7] sm:$0xff] %v284
    // Predicated region
    $region34: #{tpu_custom_call.1} parent=1 // pred_check
      _
    $region35: #{tpu_custom_call.1} parent=1 // pred_check_branch
      %287 = sbr.rel (0) target = $region37
    $region36: #{tpu_custom_call.1} parent=1 // pred_region
      %s289 = ssub.s32 128, 128
      %290 = vsyncadd [#allocation4], %s289
      %s292 = sshll.u32 [#allocation7], 4
      %s293 = int_to_ptr.vmem [resolvable:$true] %s292
      %295 = dma.vmem_to_hbm [thread:$0]  %s293, 128, %s6, [#allocation4]
    $region37: #{tpu_custom_call.1} parent=1 // pred_fallthru
      _
    // Predicated region
    $region38: #{tpu_custom_call.1} parent=1 // pred_check
      _
    $region39: #{tpu_custom_call.1} parent=1 // pred_check_branch
      %297 = sbr.rel (0) target = $region41
    $region40: #{tpu_custom_call.1} parent=1 // pred_region
      %298 = dma.done [#allocation4], 128
    $region41: #{tpu_custom_call.1} parent=1 // pred_fallthru
      _
    %299 = vsyncpa [#allocation3], 1
    %300 = vsyncpa [#allocation6], 1
    %301 = vsyncpa [#allocation4], 1

</llo_original>
